<compile_context>
chip_gen: v5e
topology: v5e:2x2
jax: 0.10.0
libtpu: 0.0.40
codegen_flags: <defaults>
</compile_context>

<pallas_src>
import jax
import jax.numpy as jnp
from jax.experimental import pallas as pl
from jax.experimental.pallas import tpu as pltpu


_SUBLANE = {4: 8, 2: 16, 1: 32}  # itemsize -> sublane packing (f32 / bf16 / int8)


def _round_up(a, b):
    return ((a + b - 1) // b) * b


def _make_kernel(valid_rows_in_last_block, needs_tail_mask):
    """Elementwise kernel; optionally neutralizes y in the ragged tail rows."""

    def kernel(x_ref, y_ref, out_ref):
        x = x_ref[...]
        y = y_ref[...]
        if needs_tail_mask:
            # Last grid step's block extends past the array. Pallas masks the
            # store, but force y=1 in the dead rows so the divide never sees
            # garbage / zero.
            is_last = pl.program_id(0) == pl.num_programs(0) - 1
            row = jax.lax.broadcasted_iota(jnp.int32, y.shape, 0)
            dead = jnp.logical_and(is_last, row >= valid_rows_in_last_block)
            y = jnp.where(dead, jnp.ones_like(y), y)
        # Exact PyTorch op order — (x+y)-y is NOT bitwise x in floating point.
        x = x + y
        x = x - y
        x = x * y
        x = x / y
        out_ref[...] = x

    return kernel


def _run_tiled(x2, y2):
    """Run the kernel over a lane-dense [rows, L] slab (no padding)."""
    rows, L = x2.shape
    itemsize = jnp.dtype(x2.dtype).itemsize
    sub = _SUBLANE.get(itemsize, 8)

    if rows <= sub:
        # Block == full array dims: always a legal block shape, single step.
        tile_rows = rows
    else:
        # ~2 MiB per buffer: 3 streams x 2 buffers = 12 MiB, under every
        # generation's scoped-VMEM default, and past the pipelining knee.
        cap = max(sub, ((2 * 1024 * 1024) // (L * itemsize)) // sub * sub)
        # Aim for >= 2 grid steps so both v7x TensorCores get work.
        half = _round_up(pl.cdiv(rows, 2), sub)
        tile_rows = max(sub, min(cap, half))

    grid = pl.cdiv(rows, tile_rows)
    tail = rows - (grid - 1) * tile_rows  # valid rows in the last block
    needs_mask = tail != tile_rows

    kernel = _make_kernel(tail, needs_mask)
    spec = pl.BlockSpec((tile_rows, L), lambda i: (i, 0))
    n = rows * L

    return pl.pallas_call(
        kernel,
        out_shape=jax.ShapeDtypeStruct((rows, L), x2.dtype),
        grid_spec=pltpu.PrefetchScalarGridSpec(
            num_scalar_prefetch=0,
            grid=(grid,),
            in_specs=[spec, spec],
            out_specs=spec,
        ),
        compiler_params=pltpu.CompilerParams(
            dimension_semantics=("parallel",),
        ),
        cost_estimate=pl.CostEstimate(
            flops=4 * n,
            transcendentals=0,
            bytes_accessed=3 * n * itemsize,
        ),
    )(x2, y2)


def binary_elementwise(x, y):
    assert x.shape == y.shape and x.dtype == y.dtype
    orig_shape = x.shape
    n = x.size
    if n == 0:
        # Nothing to compute; preserve (x, y) tuple semantics.
        return x, y

    xf = x.reshape(-1)
    yf = y.reshape(-1)

    # Largest lane width (multiple of 128, capped at 1024) dividing n exactly
    # -> reshape is the only "work" outside the kernel, no HBM padding copies.
    L = None
    for cand in (1024, 512, 256, 128):
        if n % cand == 0:
            L = cand
            break

    if L is not None:
        out2 = _run_tiled(xf.reshape(n // L, L), yf.reshape(n // L, L))
        out_x = out2.reshape(orig_shape)
    elif n * jnp.dtype(x.dtype).itemsize <= (4 << 20):
        # Small ragged total: one full-array block (1, n), still zero padding.
        out2 = _run_tiled(xf.reshape(1, n), yf.reshape(1, n))
        out_x = out2.reshape(orig_shape)
    else:
        # Rare: large total not divisible by 128. Pad the tail (y padded with
        # ones so the tail divide stays finite) and slice the result.
        # TODO(synk): split into a main tiled launch + tiny tail launch to
        # avoid this extra HBM copy on the rare ragged-large path.
        L = 128
        rows = pl.cdiv(n, L)
        pad = rows * L - n
        xf = jnp.concatenate([xf, jnp.zeros((pad,), x.dtype)])
        yf = jnp.concatenate([yf, jnp.ones((pad,), y.dtype)])
        out2 = _run_tiled(xf.reshape(rows, L), yf.reshape(rows, L))
        out_x = out2.reshape(-1)[:n].reshape(orig_shape)

    # y is returned unchanged (PyTorch returns the same tensor object) —
    # no kernel copy / HBM writeback of y needed.
    return out_x, y


if __name__ == "__main__":
    key = jax.random.PRNGKey(0)
    kx, ky = jax.random.split(key)
    B, C, H, W = 2, 4, 16, 16
    x = jax.random.normal(kx, (B, C, H, W), dtype=jnp.float32)
    # Keep y away from zero so the reference divide is well-conditioned.
    y = jax.random.normal(ky, (B, C, H, W), dtype=jnp.float32) + 2.0

    out_x, out_y = binary_elementwise(x, y)
    jax.block_until_ready((out_x, out_y))

    # Reference in plain JAX, same op order as the PyTorch module.
    rx = x
    rx = rx + y
    rx = rx - y
    rx = rx * y
    rx = rx / y
    assert jnp.allclose(out_x, rx, atol=1e-5, rtol=1e-5)
    assert jnp.array_equal(out_y, y)

    print("KERNEL_OK")
</pallas_src>

<mosaic_0001>
module attributes {stable_mosaic.version = 11 : i64} {
  func.func @kernel(%arg0: i32, %arg1: memref<2x1024xf32, #tpu.memory_space<vmem>>, %arg2: memref<2x1024xf32, #tpu.memory_space<vmem>>, %arg3: memref<2x1024xf32, #tpu.memory_space<vmem>>) attributes {dimension_semantics = [#tpu.dimension_semantics<parallel>], iteration_bounds = array<i64: 1>, scalar_prefetch = 0 : i64, scratch_operands = 0 : i64, tpu.core_type = #tpu.core_type<tc>, window_params = [{transform_indices = @transform_0, window_bounds = array<i64: 2, 1024>}, {transform_indices = @transform_1, window_bounds = array<i64: 2, 1024>}, {transform_indices = @transform_2, window_bounds = array<i64: 2, 1024>}]} {
    %c0 = arith.constant 0 : index
    %c0_0 = arith.constant 0 : index
    %0 = vector.load %arg1[%c0, %c0_0] : memref<2x1024xf32, #tpu.memory_space<vmem>>, vector<2x1024xf32>
    %c0_1 = arith.constant 0 : index
    %c0_2 = arith.constant 0 : index
    %1 = vector.load %arg2[%c0_1, %c0_2] : memref<2x1024xf32, #tpu.memory_space<vmem>>, vector<2x1024xf32>
    %2 = arith.addf %0, %1 : vector<2x1024xf32>
    %3 = arith.subf %2, %1 : vector<2x1024xf32>
    %4 = arith.mulf %3, %1 : vector<2x1024xf32>
    %5 = arith.divf %4, %1 : vector<2x1024xf32>
    %c0_3 = arith.constant 0 : index
    %c0_4 = arith.constant 0 : index
    %6 = vector.load %arg3[%c0_3, %c0_4] : memref<2x1024xf32, #tpu.memory_space<vmem>>, vector<2x1024xf32>
    tpu.vector_store %arg3[%c0_3, %c0_4], %5 {strides = array<i32>} : memref<2x1024xf32, #tpu.memory_space<vmem>>, vector<2x1024xf32>,
    return
  }
  func.func @transform_0(%arg0: i32) -> (i32, i32) {
    %c0_i32 = arith.constant 0 : i32
    %c0_i32_0 = arith.constant 0 : i32
    return %arg0, %c0_i32 : i32, i32
  }
  func.func @transform_1(%arg0: i32) -> (i32, i32) {
    %c0_i32 = arith.constant 0 : i32
    %c0_i32_0 = arith.constant 0 : i32
    return %arg0, %c0_i32 : i32, i32
  }
  func.func @transform_2(%arg0: i32) -> (i32, i32) {
    %c0_i32 = arith.constant 0 : i32
    %c0_i32_0 = arith.constant 0 : i32
    return %arg0, %c0_i32 : i32, i32
  }
}

</mosaic_0001>

<llo_original>
// kernel: tpu_custom_call.1
$region0: #{tpu_custom_call.1}
  #allocation0 [shape = 'u32[]', space=smem, size = 0x4, offset = 0x4, fixed_abs, tag = 'smem constant byte address 0x4 - core index']
  #allocation1 [shape = 'u32[72,128]{1,0:T(1,128)}', space=vmem, size = 0x9000, scoped, tag = 'internal scratch']
  %s0 = inlined_call_operand.hbm [shape: f32[2,1024], index: 0, kind: input, shape index: {}]
  %s1 = inlined_call_operand.hbm [shape: f32[2,1024], index: 1, kind: input, shape index: {}]
  %s2 = inlined_call_operand.hbm [shape: f32[2,1024], index: 2, kind: output, shape index: {}]
  %s3 = sld [smem:[#allocation0]]
  $region26: #{tpu_custom_call.1} parent=0
    _
  %s5 = ssub.s32 1, %s3
  %s6 = scalar_select 0, %s5, %s3
  $region1: #{tpu_custom_call.1} parent=0
    #allocation2 [shape = 'u8[8192]{0}', space=vmem, size = 0x2000, scoped, tag = 'input window, operand 0, single buffered']
    #allocation3 [shape = 's32[1]{0}', space=sflag, size = 0x4, scoped, tag = 'scoped memory for tpu_custom_call.1']
    #allocation4 [shape = 's32[1]{0}', space=sflag, size = 0x4, scoped, tag = 'scoped memory for tpu_custom_call.1']
    #allocation5 [shape = 'u8[8192]{0}', space=vmem, size = 0x2000, scoped, tag = 'input window, operand 1, single buffered']
    #allocation6 [shape = 's32[1]{0}', space=sflag, size = 0x4, scoped, tag = 'scoped memory for tpu_custom_call.1']
    #allocation7 [shape = 'u8[8192]{0}', space=vmem, size = 0x2000, scoped, tag = 'output window, operand 0, single buffered']
    %7 = vsyncpa [#allocation3], 0
    %8 = vsyncpa [#allocation6], 0
    %9 = vsyncpa [#allocation4], 0
    // Predicated region
    $region2: #{tpu_custom_call.1} parent=1 // pred_check
      _
    $region3: #{tpu_custom_call.1} parent=1 // pred_check_branch
      %11 = sbr.rel (0) target = $region5
    $region4: #{tpu_custom_call.1} parent=1 // pred_region
      %13 = vsyncadd [#allocation3], 0
      %s15 = sshll.u32 %s0, 4
      %s16 = int_to_ptr.hbm [resolvable:$true] %s15
      %s17 = sshll.u32 [#allocation2], 4
      %s18 = int_to_ptr.vmem [resolvable:$true] %s17
      %20 = dma.hbm_to_vmem [thread:$0]  %s16, 256, %s18, [#allocation3]
    $region5: #{tpu_custom_call.1} parent=1 // pred_fallthru
      _
    // Predicated region
    $region6: #{tpu_custom_call.1} parent=1 // pred_check
      _
    $region7: #{tpu_custom_call.1} parent=1 // pred_check_branch
      %22 = sbr.rel (0) target = $region9
    $region8: #{tpu_custom_call.1} parent=1 // pred_region
      %24 = vsyncadd [#allocation6], 0
      %s26 = sshll.u32 %s1, 4
      %s27 = int_to_ptr.hbm [resolvable:$true] %s26
      %s28 = sshll.u32 [#allocation5], 4
      %s29 = int_to_ptr.vmem [resolvable:$true] %s28
      %31 = dma.hbm_to_vmem [thread:$0]  %s27, 256, %s29, [#allocation6]
    $region9: #{tpu_custom_call.1} parent=1 // pred_fallthru
      _
    // Predicated region
    $region10: #{tpu_custom_call.1} parent=1 // pred_check
      _
    $region11: #{tpu_custom_call.1} parent=1 // pred_check_branch
      %33 = sbr.rel (0) target = $region13
    $region12: #{tpu_custom_call.1} parent=1 // pred_region
      %35 = dma.done [#allocation3], 256
    $region13: #{tpu_custom_call.1} parent=1 // pred_fallthru
      _
    // Predicated region
    $region14: #{tpu_custom_call.1} parent=1 // pred_check
      _
    $region15: #{tpu_custom_call.1} parent=1 // pred_check_branch
      %37 = sbr.rel (0) target = $region17
    $region16: #{tpu_custom_call.1} parent=1 // pred_region
      %39 = dma.done [#allocation6], 256
    $region17: #{tpu_custom_call.1} parent=1 // pred_fallthru
      _
    %v40 = vld [vmem:[#allocation2] sm:$0xff]
    %v41 = vld [vmem:[#allocation2 + $0x8] sm:$0xff]
    %v42 = vld [vmem:[#allocation5] sm:$0xff]
    %v43 = vld [vmem:[#allocation5 + $0x8] sm:$0xff]
    %v44 = vadd.f32 %v40, %v42
    %v45 = vadd.f32 %v41, %v43
    %v46 = vsub.f32 %v44, %v42
    %v47 = vsub.f32 %v45, %v43
    %v48 = vmul.f32 %v46, %v42
    %v49 = vmul.f32 %v47, %v43
    %v50 = vrcp.pop %v42
    %v51 = vmul.f32 %v42, %v50
    %v52 = vsub.f32 1.0, %v51
    %v53 = vmul.f32 %v50, %v52
    %v54 = vadd.f32 %v50, %v53
    %vm55 = vweird.f32 %v42
    %vm56 = vweird.f32 %v50
    %vm57 = vmor %vm55, %vm56
    %v58 = vsel %vm57, %v50, %v54
    %v59 = vand.u32 2147483647, %v42
    %vm60 = vcmp.eq.f32.partialorder %v59, 8.507059e+37
    %v61 = vand.u32 %v42, 2147483648
    %v62 = vor.u32 1.1754944e-38, %v61
    %v63 = vsel %vm60, %v62, %v58
    %v64 = vmul.f32 %v48, %v63
    %v65 = vrcp.pop %v43
    %v66 = vmul.f32 %v43, %v65
    %v67 = vsub.f32 1.0, %v66
    %v68 = vmul.f32 %v65, %v67
    %v69 = vadd.f32 %v65, %v68
    %vm70 = vweird.f32 %v43
    %vm71 = vweird.f32 %v65
    %vm72 = vmor %vm70, %vm71
    %v73 = vsel %vm72, %v65, %v69
    %v74 = vand.u32 2147483647, %v43
    %vm75 = vcmp.eq.f32.partialorder %v74, 8.507059e+37
    %v76 = vand.u32 %v43, 2147483648
    %v77 = vor.u32 1.1754944e-38, %v76
    %v78 = vsel %vm75, %v77, %v73
    %v79 = vmul.f32 %v49, %v78
    %80 = vst [vmem:[#allocation7] sm:$0xff] %v64
    %81 = vst [vmem:[#allocation7 + $0x8] sm:$0xff] %v79
    // Predicated region
    $region18: #{tpu_custom_call.1} parent=1 // pred_check
      _
    $region19: #{tpu_custom_call.1} parent=1 // pred_check_branch
      %83 = sbr.rel (0) target = $region21
    $region20: #{tpu_custom_call.1} parent=1 // pred_region
      %85 = vsyncadd [#allocation4], 0
      %s87 = sshll.u32 [#allocation7], 4
      %s88 = int_to_ptr.vmem [resolvable:$true] %s87
      %s89 = sshll.u32 %s2, 4
      %s90 = int_to_ptr.hbm [resolvable:$true] %s89
      %92 = dma.vmem_to_hbm [thread:$0]  %s88, 256, %s90, [#allocation4]
    $region21: #{tpu_custom_call.1} parent=1 // pred_fallthru
      _
    // Predicated region
    $region22: #{tpu_custom_call.1} parent=1 // pred_check
      _
    $region23: #{tpu_custom_call.1} parent=1 // pred_check_branch
      %94 = sbr.rel (0) target = $region25
    $region24: #{tpu_custom_call.1} parent=1 // pred_region
      %96 = dma.done [#allocation4], 256
    $region25: #{tpu_custom_call.1} parent=1 // pred_fallthru
      _
    %97 = vsyncpa [#allocation3], 1
    %98 = vsyncpa [#allocation6], 1
    %99 = vsyncpa [#allocation4], 1

</llo_original>
